<compile_context>
chip_gen: v6e
topology: v6e:2x2x1
jax: 0.10.0
libtpu: 0.0.40
codegen_flags: <defaults>
</compile_context>

<pallas_src>
import functools

import jax
import jax.numpy as jnp
from jax import lax
from jax.experimental import pallas as pl
from jax.experimental.pallas import tpu as pltpu

EPS = 1e-5          # BatchNorm2d default eps
NEG_SLOPE = 0.2     # LeakyReLU(0.2)


# --------------------------------------------------------------------------
# helpers
# --------------------------------------------------------------------------
def _vmem_limit_bytes(default=32 * 1024 * 1024):
    """Generation-aware scoped-VMEM limit (v5e/v6e: 128 MiB, v7x: 64 MiB)."""
    try:
        cap = int(pltpu.get_tpu_info().vmem_capacity_bytes)
    except Exception:
        return default
    return int(min(cap * 3 // 4, 96 * 1024 * 1024))


def _hw_tile(hw, target=8192):
    """Largest lane-friendly tile of the H*W axis (multiple of 128 dividing hw,
    or the full axis if it is small / awkwardly sized)."""
    if hw <= target:
        return hw
    t = (target // 128) * 128
    while t >= 128:
        if hw % t == 0:
            return t
        t -= 128
    return hw


# --------------------------------------------------------------------------
# Pass 1: per-channel batch statistics (sum, sum of squares)
# --------------------------------------------------------------------------
def bn_stats_kernel(x_ref, o_ref):
    """x_ref: (1, C, hw_tile) raw NCHW activations (lane-dense H*W axis).
    o_ref: (C, 2) resident accumulator: col 0 = sum(x), col 1 = sum(x*x)."""
    @pl.when((pl.program_id(0) == 0) & (pl.program_id(1) == 0))
    def _():
        o_ref[...] = jnp.zeros_like(o_ref)

    x = x_ref[0].astype(jnp.float32)                       # (C, hw_tile)
    o_ref[:, 0:1] += jnp.sum(x, axis=1, keepdims=True)
    o_ref[:, 1:2] += jnp.sum(x * x, axis=1, keepdims=True)


def _batch_stats(x3):
    """x3: (N, C, H*W) view of the NCHW input. Returns (scale, shift), each (C,1)."""
    N, C, HW = x3.shape
    hw_t = _hw_tile(HW)
    sums = pl.pallas_call(
        bn_stats_kernel,
        out_shape=jax.ShapeDtypeStruct((C, 2), jnp.float32),
        grid=(N, HW // hw_t),
        in_specs=[pl.BlockSpec((1, C, hw_t), lambda n, t: (n, 0, t))],
        out_specs=pl.BlockSpec((C, 2), lambda n, t: (0, 0)),
        compiler_params=pltpu.CompilerParams(
            dimension_semantics=("arbitrary", "arbitrary")),
    )(x3)
    cnt = float(N * HW)
    mean = sums[:, 0] / cnt
    # TODO(synk): E[x^2]-E[x]^2 is cancellation-prone for huge, non-zero-mean
    # activations; switch to a shifted / Welford accumulation if that matters.
    var = jnp.maximum(sums[:, 1] / cnt - mean * mean, 0.0)  # biased var (PyTorch BN)
    scale = lax.rsqrt(var + EPS)
    shift = -mean * scale
    return scale.reshape(C, 1), shift.reshape(C, 1)


# --------------------------------------------------------------------------
# Pass 2: fused BN-normalize + LeakyReLU + sub-pixel ConvTranspose2d
# --------------------------------------------------------------------------
def fused_convT_kernel(x_ref, scale_ref, shift_ref, w_ref, o_ref, ypad_ref, *,
                       H, W, Cin, Hq, Wq, Kh_sub, Kw_sub, Dh, Dw):
    """One batch element.

    x_ref    : (1, Cin, H*W)   raw NCHW input (lane-dense H*W)
    scale_ref: (Cin, 1)        1/sqrt(var+eps)
    shift_ref: (Cin, 1)        -mean/sqrt(var+eps)
    w_ref    : (Kh_sub*Kw_sub*Cin, PCp)  phase-fused sub-pixel weights, bf16,
                                         output dim zero-padded to PCp (mult of 128)
    o_ref    : (1, Hq*Wq, PCp) phase-major output (bf16, lane-dense)
    ypad_ref : (Hs, Ws, Cin)   bf16 VMEM scratch (zero border = conv padding)
    """
    Hs, Ws, _ = ypad_ref.shape
    zdt = ypad_ref.dtype

    # --- zero only the pad border (O(perimeter), not the full slab) -------------
    if Dh > 0:
        ypad_ref[0:Dh, :, :] = jnp.zeros((Dh, Ws, Cin), zdt)
    if Hs > Dh + H:
        ypad_ref[Dh + H:Hs, :, :] = jnp.zeros((Hs - Dh - H, Ws, Cin), zdt)
    if Dw > 0:
        ypad_ref[Dh:Dh + H, 0:Dw, :] = jnp.zeros((H, Dw, Cin), zdt)
    if Ws > Dw + W:
        ypad_ref[Dh:Dh + H, Dw + W:Ws, :] = jnp.zeros((H, Ws - Dw - W, Cin), zdt)

    # --- BN normalize + LeakyReLU on the lane-dense (Cin, H*W) layout (f32 VPU) --
    x = x_ref[0].astype(jnp.float32)                       # (Cin, H*W)
    y = x * scale_ref[...] + shift_ref[...]                # per-channel affine
    y = jnp.where(y >= 0, y, NEG_SLOPE * y)                # LeakyReLU(0.2)

    # In-VMEM relayout (Cin, H*W) -> (H, W, Cin); replaces the old wrapper-side
    # NCHW->NHWC transpose that cost a full HBM read+write.
    y_hwc = y.T.reshape(H, W, Cin).astype(zdt)
    ypad_ref[Dh:Dh + H, Dw:Dw + W, :] = y_hwc

    PCp = w_ref.shape[1]
    if Cin >= 128:
        # Large channel count: accumulate Ksub^2 matmuls with K = Cin each
        # instead of materializing the concatenated (Hq*Wq, Ksub^2*Cin) matrix.
        acc = jnp.zeros((Hq * Wq, PCp), jnp.float32)
        for th in range(Kh_sub):                           # static unroll
            for tw in range(Kw_sub):
                patch = ypad_ref[th:th + Hq, tw:tw + Wq, :].reshape(Hq * Wq, Cin)
                r0 = (th * Kw_sub + tw) * Cin
                acc = acc + jnp.dot(patch, w_ref[r0:r0 + Cin, :],
                                    preferred_element_type=jnp.float32)
        o_ref[0] = acc.astype(o_ref.dtype)
    else:
        # Small channel count: fuse all stride phases into ONE matmul so the MXU
        # contraction depth is Ksub^2*Cin rather than Cin.
        cols = []
        for th in range(Kh_sub):                           # static unroll
            for tw in range(Kw_sub):
                patch = ypad_ref[th:th + Hq, tw:tw + Wq, :]   # (Hq, Wq, Cin) bf16
                cols.append(patch.reshape(Hq * Wq, Cin))
        patches = jnp.concatenate(cols, axis=-1)           # (Hq*Wq, Ksub^2*Cin)
        res = jnp.dot(patches, w_ref[...], preferred_element_type=jnp.float32)
        o_ref[0] = res.astype(o_ref.dtype)


def _subpixel_weights(w_t, stride, padding):
    """torch ConvTranspose2d weight (Cin, Cout, Kh, Kw) -> phase-fused matmul weight.

    Returns (W_all, Kh_sub, Kw_sub, Dh, Dw) with
      W_all[(th*Kw_sub+tw)*Cin+ci, (ph*s+pw)*Cout+co]
    such that out[n, s*qh+ph, s*qw+pw, co] =
      sum_{th,tw,ci} ypad[n, qh+th, qw+tw, ci] * W_all[...],
    where ypad is the normalized activation zero-padded by (Dh, Dw) on the top/left.
    """
    Cin, Cout, Kh, Kw = w_t.shape
    s = stride
    # flipped, i/o swapped weight: (Kh, Kw, Cin, Cout)
    w_flip = jnp.transpose(jnp.flip(w_t, axis=(2, 3)), (2, 3, 0, 1)).astype(jnp.float32)

    def axis_params(K):
        pad = K - 1 - padding
        assert pad >= 0  # TODO(synk): padding > kernel-1 (output cropping) not handled
        m, d, T = [], [], []
        for phi in range(s):
            mm = (pad - phi) % s
            dd = (pad - phi) // s
            tt = 0 if mm >= K else (K - mm + s - 1) // s
            m.append(mm); d.append(dd); T.append(tt)
        D = max(0, max(d))
        shift = [D - dd for dd in d]
        Ksub = max(1, max(shift[p] + T[p] for p in range(s)))
        return m, T, D, shift, Ksub

    mh, Th, Dh, sh_h, Kh_sub = axis_params(Kh)
    mw, Tw, Dw, sh_w, Kw_sub = axis_params(Kw)

    Wp = jnp.zeros((s, s, Kh_sub, Kw_sub, Cin, Cout), jnp.float32)
    for ph in range(s):
        for th in range(Th[ph]):
            kh = mh[ph] + th * s
            for pw in range(s):
                for tw in range(Tw[pw]):
                    kw = mw[pw] + tw * s
                    Wp = Wp.at[ph, pw, sh_h[ph] + th, sh_w[pw] + tw].set(w_flip[kh, kw])
    W_all = jnp.transpose(Wp, (2, 3, 4, 0, 1, 5)).reshape(
        Kh_sub * Kw_sub * Cin, s * s * Cout)
    return W_all, Kh_sub, Kw_sub, Dh, Dw


def transition_block_transpose2d(x_nchw, w_t, *, stride=1, padding=0):
    """Forward pass of TransitionBlockTranspose2d (batchnorm=True branch)."""
    N, Cin, H, W = x_nchw.shape
    Cin_w, Cout, Kh, Kw = w_t.shape
    assert Cin == Cin_w
    s = int(stride)

    x3 = x_nchw.reshape(N, Cin, H * W)          # free reshape, no HBM transpose

    # ---- pass 1: per-channel batch mean / rsqrt(var) ----
    scale, shift = _batch_stats(x3)

    # ---- pass 2: fused normalize + LeakyReLU + sub-pixel transposed conv ----
    Ho = (H - 1) * s - 2 * padding + Kh
    Wo = (W - 1) * s - 2 * padding + Kw
    W_all, Kh_sub, Kw_sub, Dh, Dw = _subpixel_weights(w_t, s, padding)

    PC = s * s * Cout
    PCp = -(-PC // 128) * 128                   # lane-dense output (unmasked stores)
    KKC = Kh_sub * Kw_sub * Cin
    W_pad = jnp.pad(W_all, ((0, 0), (0, PCp - PC))).astype(jnp.bfloat16)

    Hq = -(-Ho // s)
    Wq = ((-(-Wo // s) + 7) // 8) * 8           # mult of 8 -> layout-preserving patch reshape
    Hs = max(Hq + Kh_sub - 1, Dh + H)
    Ws = max(Wq + Kw_sub - 1, Dw + W)

    kern = functools.partial(fused_convT_kernel, H=H, W=W, Cin=Cin,
                             Hq=Hq, Wq=Wq, Kh_sub=Kh_sub, Kw_sub=Kw_sub,
                             Dh=Dh, Dw=Dw)
    # TODO(synk): for large H/W (v7x: 64 MiB VMEM) add an output-row-tile grid
    # axis with Kh_sub-1 halo rows (pl.Element row blocks or manual DMA) so the
    # per-step input/scratch/output blocks stay a few MiB each.
    # TODO(synk): request single-buffering (pl.Buffered(1)) for the constant
    # weight operand; it never changes across the grid.
    out_k = pl.pallas_call(
        kern,
        out_shape=jax.ShapeDtypeStruct((N, Hq * Wq, PCp), jnp.bfloat16),
        grid=(N,),
        in_specs=[
            pl.BlockSpec((1, Cin, H * W), lambda n: (n, 0, 0)),
            pl.BlockSpec((Cin, 1), lambda n: (0, 0)),
            pl.BlockSpec((Cin, 1), lambda n: (0, 0)),
            pl.BlockSpec((KKC, PCp), lambda n: (0, 0)),
        ],
        out_specs=pl.BlockSpec((1, Hq * Wq, PCp), lambda n: (n, 0, 0)),
        scratch_shapes=[pltpu.VMEM((Hs, Ws, Cin), jnp.bfloat16)],
        compiler_params=pltpu.CompilerParams(
            dimension_semantics=("parallel",),
            vmem_limit_bytes=_vmem_limit_bytes()),
    )(x3, scale, shift, W_pad)

    # phase-major bf16 -> interleaved NCHW (layout plumbing in the wrapper)
    o = out_k[..., :PC].reshape(N, Hq, Wq, s, s, Cout)
    o = jnp.transpose(o, (0, 5, 1, 3, 2, 4)).reshape(N, Cout, Hq * s, Wq * s)
    return o[:, :, :Ho, :Wo].astype(x_nchw.dtype)


# --------------------------------------------------------------------------
# Pure-JAX reference (f32) and self-test
# --------------------------------------------------------------------------
def reference(x_nchw, w_t, stride, padding):
    x = jnp.transpose(x_nchw, (0, 2, 3, 1)).astype(jnp.float32)
    mean = jnp.mean(x, axis=(0, 1, 2), keepdims=True)
    var = jnp.mean((x - mean) ** 2, axis=(0, 1, 2), keepdims=True)
    xn = (x - mean) / jnp.sqrt(var + EPS)
    xl = jnp.where(xn >= 0, xn, NEG_SLOPE * xn)
    K = w_t.shape[2]
    w_conv = jnp.transpose(jnp.flip(w_t, axis=(2, 3)), (2, 3, 0, 1)).astype(jnp.float32)
    out = lax.conv_general_dilated(
        xl, w_conv, window_strides=(1, 1),
        padding=[(K - 1 - padding,) * 2] * 2,
        lhs_dilation=(stride, stride),
        dimension_numbers=("NHWC", "HWIO", "NHWC"))
    return jnp.transpose(out, (0, 3, 1, 2))


if __name__ == "__main__":
    key = jax.random.PRNGKey(0)
    kx, kw = jax.random.split(key)

    # in_channels=4, out_channels=8, kernel=3, stride=2, padding=1, input (2,4,16,16)
    N, Cin, H, W = 2, 4, 16, 16
    Cout, K, stride, padding = 8, 3, 2, 1

    x = jax.random.normal(kx, (N, Cin, H, W), jnp.float32)
    bound = 1.0 / float((Cin * K * K) ** 0.5)
    w_t = jax.random.uniform(kw, (Cin, Cout, K, K), jnp.float32, -bound, bound)

    out = transition_block_transpose2d(x, w_t, stride=stride, padding=padding)
    out = jax.block_until_ready(out)

    Ho = (H - 1) * stride - 2 * padding + K
    Wo = (W - 1) * stride - 2 * padding + K
    assert out.shape == (N, Cout, Ho, Wo), out.shape

    ref = reference(x, w_t, stride, padding)
    # bf16 MXU inputs + bf16 output with f32 accumulation -> loose-ish tolerance
    if not jnp.allclose(out, ref, atol=3e-2, rtol=3e-2):
        err = float(jnp.max(jnp.abs(out - ref)))
        raise AssertionError(f"Pallas output does not match JAX reference (max err {err})")

    print("KERNEL_OK")
</pallas_src>

<mosaic_0001>
module attributes {stable_mosaic.version = 11 : i64} {
  func.func @bn_stats_kernel(%arg0: i32, %arg1: i32, %arg2: memref<1x4x256xf32, #tpu.memory_space<vmem>>, %arg3: memref<4x2xf32, #tpu.memory_space<vmem>>) attributes {dimension_semantics = [#tpu.dimension_semantics<arbitrary>, #tpu.dimension_semantics<arbitrary>], iteration_bounds = array<i64: 2, 1>, scalar_prefetch = 0 : i64, scratch_operands = 0 : i64, tpu.core_type = #tpu.core_type<tc>, window_params = [{transform_indices = @transform_0, window_bounds = array<i64: 1, 4, 256>}, {pipeline_mode = #tpu.pipeline_mode<synchronous>, transform_indices = @transform_1, window_bounds = array<i64: 4, 2>}]} {
    %c0_i32 = arith.constant 0 : i32
    %0 = arith.cmpi eq, %arg0, %c0_i32 : i32
    %c0_i32_0 = arith.constant 0 : i32
    %1 = arith.cmpi eq, %arg1, %c0_i32_0 : i32
    %2 = arith.andi %0, %1 : i1
    %3 = arith.extui %2 : i1 to i32
    %c0_i32_1 = arith.constant 0 : i32
    %4 = arith.cmpi ne, %3, %c0_i32_1 : i32
    scf.if %4 {
      %cst_12 = arith.constant 0.000000e+00 : f32
      %18 = vector.broadcast %cst_12 : f32 to vector<4x2xf32>
      %c0_13 = arith.constant 0 : index
      %c0_14 = arith.constant 0 : index
      %19 = vector.load %arg3[%c0_13, %c0_14] : memref<4x2xf32, #tpu.memory_space<vmem>>, vector<4x2xf32>
      tpu.vector_store %arg3[%c0_13, %c0_14], %18 {strides = array<i32>} : memref<4x2xf32, #tpu.memory_space<vmem>>, vector<4x2xf32>,
    } else {
    }
    %c0 = arith.constant 0 : index
    %c0_2 = arith.constant 0 : index
    %c0_3 = arith.constant 0 : index
    %5 = vector.load %arg2[%c0, %c0_2, %c0_3] : memref<1x4x256xf32, #tpu.memory_space<vmem>>, vector<1x4x256xf32>
    %6 = vector.shape_cast %5 : vector<1x4x256xf32> to vector<4x256xf32>
    %c0_4 = arith.constant 0 : index
    %c0_5 = arith.constant 0 : index
    %7 = vector.load %arg3[%c0_4, %c0_5] : memref<4x2xf32, #tpu.memory_space<vmem>>, vector<4x1xf32>
    %cst = arith.constant dense<0.000000e+00> : vector<4xf32>
    %8 = vector.multi_reduction <add>, %6, %cst [1] : vector<4x256xf32> to vector<4xf32>
    %9 = vector.shape_cast %8 : vector<4xf32> to vector<4x1xf32>
    %10 = arith.addf %7, %9 : vector<4x1xf32>
    %c0_6 = arith.constant 0 : index
    %c0_7 = arith.constant 0 : index
    %11 = vector.load %arg3[%c0_6, %c0_7] : memref<4x2xf32, #tpu.memory_space<vmem>>, vector<4x1xf32>
    tpu.vector_store %arg3[%c0_6, %c0_7], %10 {strides = array<i32>} : memref<4x2xf32, #tpu.memory_space<vmem>>, vector<4x1xf32>,
    %c0_8 = arith.constant 0 : index
    %c1 = arith.constant 1 : index
    %12 = vector.load %arg3[%c0_8, %c1] : memref<4x2xf32, #tpu.memory_space<vmem>>, vector<4x1xf32>
    %13 = arith.mulf %6, %6 : vector<4x256xf32>
    %cst_9 = arith.constant dense<0.000000e+00> : vector<4xf32>
    %14 = vector.multi_reduction <add>, %13, %cst_9 [1] : vector<4x256xf32> to vector<4xf32>
    %15 = vector.shape_cast %14 : vector<4xf32> to vector<4x1xf32>
    %16 = arith.addf %12, %15 : vector<4x1xf32>
    %c0_10 = arith.constant 0 : index
    %c1_11 = arith.constant 1 : index
    %17 = vector.load %arg3[%c0_10, %c1_11] : memref<4x2xf32, #tpu.memory_space<vmem>>, vector<4x1xf32>
    tpu.vector_store %arg3[%c0_10, %c1_11], %16 {strides = array<i32>} : memref<4x2xf32, #tpu.memory_space<vmem>>, vector<4x1xf32>,
    return
  }
  func.func @transform_0(%arg0: i32, %arg1: i32) -> (i32, i32, i32) {
    %c0_i32 = arith.constant 0 : i32
    %c0_i32_0 = arith.constant 0 : i32
    return %arg0, %c0_i32, %arg1 : i32, i32, i32
  }
  func.func @transform_1(%arg0: i32, %arg1: i32) -> (i32, i32) {
    %c0_i32 = arith.constant 0 : i32
    %c0_i32_0 = arith.constant 0 : i32
    %c0_i32_1 = arith.constant 0 : i32
    return %c0_i32, %c0_i32_0 : i32, i32
  }
}

</mosaic_0001>

<llo_original>
// kernel: tpu_custom_call.1
$region0: #{tpu_custom_call.1}
  #allocation0 [shape = 'u32[]', space=smem, size = 0x4, offset = 0x4, fixed_abs, tag = 'smem constant byte address 0x4 - core index']
  #allocation1 [shape = 'u32[144,128]{1,0:T(1,128)}', space=vmem, size = 0x12000, scoped, tag = 'internal scratch']
  %s0 = inlined_call_operand.hbm [shape: f32[2,4,256], index: 0, kind: input, shape index: {}]
  %s1 = inlined_call_operand.vmem [shape: f32[4,2], index: 1, kind: output, shape index: {}]
  %s2 = sld [smem:[#allocation0]]
  $region45: #{tpu_custom_call.1} parent=0
    _
  %s4 = ssub.s32 1, %s2
  %s5 = scalar_select 0, %s4, %s2
  $region1: #{tpu_custom_call.1} parent=0
    #allocation2 [shape = 'u8[8192]{0}', space=vmem, size = 0x2000, scoped, tag = 'input window, operand 0']
    #allocation3 [shape = 's32[2]{0}', space=sflag, size = 0x8, scoped, tag = 'scoped memory for tpu_custom_call.1']
    %6 = vsyncpa [#allocation3], 0
    %s7 = scalar_lea.sflag [#allocation3], 1
    %8 = vsyncpa %s7, 0
    loop: start=0, step=1, limit=4
    $region2: #{tpu_custom_call.1} parent=1 // loop_pre_header
      _
    $region3: #{tpu_custom_call.1} parent=1 // loop_header
      %s10 = sphi 0, %s14
      %p11 = scmp.ge.s32.totalorder %s10, 4
      %s17 = sphi 0, %s29
      %s18 = sphi 0, %s25
      %s19 = sphi 0, %s17
      %s20 = sphi 0, %s18
      %s21 = sphi 0, %s19
      %s22 = sphi 0, %s20
      %s34 = sphi 0, %s36
      %s37 = sphi 0, %s34
      %s38 = sphi 0, %s37
      %s54 = sphi 0, %s38
      %s58 = sphi 0, %s58
      %s60 = sphi 0, %s58
      %s61 = sphi 0, %s60
      %s75 = sphi 0, %s61
    $region4: #{tpu_custom_call.1} parent=1 // loop_header_branch
      %13 = sbr.rel (%p11) target = $region8
    $region5: #{tpu_custom_call.1} parent=1 // loop_body
      %s15 = ssub.s32 %s10, 1
      %s16 = ssub.s32 %s10, 2
      %s23 = sadd.s32 1, %s18
      %p24 = scmp.ge.s32.totalorder %s23, 1
      %s25 = scalar_select %p24, 0, %s23
      %s26 = sadd.s32 1, %s17
      %s27 = scalar_select %p24, %s26, %s17
      %p28 = scmp.ge.s32.totalorder %s27, 2
      %s29 = scalar_select %p28, 0, %s27
      %s30 = ssub.s32 %s17, %s29
      %s31 = ssub.s32 %s18, %s25
      %s32 = sor.u32 %s30, %s31
      %p33 = scmp.eq.s32.totalorder %s32, 0
      %s35 = sadd.s32 %s34, 1
      %s36 = scalar_select %p33, %s34, %s35
      %p39 = pneg %p33
      %p40 = scmp.eq.s32.totalorder %s10, 1
      %p41 = por %p39, %p40
      %p42 = scmp.ne.s32.totalorder %s34, %s37
      %p43 = scmp.eq.s32.totalorder %s10, 0
      %p44 = por %p42, %p43
      %p45 = scmp.ne.s32.totalorder %s34, %s37
      %p46 = scmp.eq.s32.totalorder %s15, 1
      %p47 = por %p45, %p46
      %p48 = scmp.ne.s32.totalorder %s37, %s38
      %p49 = scmp.eq.s32.totalorder %s15, 0
      %p50 = por %p48, %p49
      %p51 = scmp.ne.s32.totalorder %s37, %s38
      %p52 = scmp.eq.s32.totalorder %s16, 1
      %p53 = por %p51, %p52
      %p55 = scmp.ne.s32.totalorder %s38, %s54
      %p56 = scmp.eq.s32.totalorder %s16, 0
      %p57 = por %p55, %p56
      %s59 = sadd.s32 %s58, 1
      %p62 = scmp.eq.s32.totalorder %s10, 1
      %p63 = scmp.ne.s32.totalorder %s58, %s60
      %p64 = scmp.eq.s32.totalorder %s10, 0
      %p65 = por %p63, %p64
      %p66 = scmp.ne.s32.totalorder %s58, %s60
      %p67 = scmp.eq.s32.totalorder %s15, 1
      %p68 = por %p66, %p67
      %p69 = scmp.ne.s32.totalorder %s60, %s61
      %p70 = scmp.eq.s32.totalorder %s15, 0
      %p71 = por %p69, %p70
      %p72 = scmp.ne.s32.totalorder %s60, %s61
      %p73 = scmp.eq.s32.totalorder %s16, 1
      %p74 = por %p72, %p73
      %p76 = scmp.ne.s32.totalorder %s61, %s75
      %p77 = scmp.eq.s32.totalorder %s16, 0
      %p78 = por %p76, %p77
      %p79 = scmp.le.s32.totalorder 1, %s10
      %p80 = scmp.lt.s32.totalorder %s10, 3
      %p81 = pnand %p79, %p80
      %p82 = pneg %p81
      // Predicated region
      $region9: #{tpu_custom_call.1} parent=5 // pred_check
        _
      $region10: #{tpu_custom_call.1} parent=5 // pred_check_branch
        %84 = sbr.rel (%p81) target = $region12
      $region11: #{tpu_custom_call.1} parent=5 // pred_region
        %s85 = ssub.s32 %s10, 1
      $region12: #{tpu_custom_call.1} parent=5 // pred_fallthru
        _
      %p86 = scmp.lt.s32.totalorder %s10, 2
      // Predicated region
      $region13: #{tpu_custom_call.1} parent=5 // pred_check
        %p87 = pneg %p86
      $region14: #{tpu_custom_call.1} parent=5 // pred_check_branch
        %89 = sbr.rel (%p87) target = $region16
      $region15: #{tpu_custom_call.1} parent=5 // pred_region
        // Predicated region
        $region17: #{tpu_custom_call.1} parent=15 // pred_check
          %p90 = pneg %p44
        $region18: #{tpu_custom_call.1} parent=15 // pred_check_branch
          %92 = sbr.rel (%p90) target = $region20
        $region19: #{tpu_custom_call.1} parent=15 // pred_region
          %s93 = sand.u32 %s34, 1
          %s94 = scalar_lea.sflag [#allocation3], %s93
          %s95 = sand.u32 %s34, 1
          %s96 = smul.addr %s95, 8
          %s97 = scalar_lea.vmem [#allocation2], %s96
          %s98 = smul.u32 2, %s18
          %s100 = ssub.s32 128, 128
          %101 = vsyncadd %s94, %s100
          %s102 = smul.addr %s17, 2
          %s103 = sadd.s32 %s98, %s102
          %s104 = smul.addr %s103, 64
          %s105 = scalar_lea.hbm %s0, %s104
          %s107 = sshll.u32 %s97, 4
          %s108 = int_to_ptr.vmem [resolvable:$true] %s107
          %110 = dma.hbm_to_vmem [thread:$0]  %s105, 128, %s108, %s94
        $region20: #{tpu_custom_call.1} parent=15 // pred_fallthru
          _
      $region16: #{tpu_custom_call.1} parent=5 // pred_fallthru
        _
      %p111 = scmp.le.s32.totalorder 1, %s10
      %p112 = scmp.lt.s32.totalorder %s10, 3
      %p113 = pnand %p111, %p112
      %p114 = pneg %p113
      // Predicated region
      $region21: #{tpu_custom_call.1} parent=5 // pred_check
        _
      $region22: #{tpu_custom_call.1} parent=5 // pred_check_branch
        %116 = sbr.rel (%p113) target = $region24
      $region23: #{tpu_custom_call.1} parent=5 // pred_region
        %s117 = ssub.s32 %s10, 1
        %s118 = sand.u32 %s37, 1
        %s119 = scalar_lea.sflag [#allocation3], %s118
        %s120 = sand.u32 %s37, 1
        %s121 = smul.addr %s120, 8
        %s122 = scalar_lea.vmem [#allocation2], %s121
        // Predicated region
        $region25: #{tpu_custom_call.1} parent=23 // pred_check
          %p123 = pneg %p50
        $region26: #{tpu_custom_call.1} parent=23 // pred_check_branch
          %125 = sbr.rel (%p123) target = $region28
        $region27: #{tpu_custom_call.1} parent=23 // pred_region
          %126 = dma.done %s119, 128
        $region28: #{tpu_custom_call.1} parent=23 // pred_fallthru
          _
        %s127 = sand.u32 %s37, 1
        %s128 = scalar_lea.sflag [#allocation3], %s127
        %s129 = sand.u32 %s37, 1
        %s130 = smul.addr %s129, 8
        %s131 = scalar_lea.vmem [#allocation2], %s130
        %p132 = pneg %p50
        %p133 = pneg %p47
        %p134 = pneg %p71
        %p135 = pneg %p68
        %s136 = smul.u32 2, %s20
        %p137 = scmp.eq.s32.totalorder %s19, 0
        %p138 = scmp.eq.s32.totalorder %s20, 0
        %p139 = pnand %p137, %p138
        %p140 = pneg %p139
        // Predicated region
        $region29: #{tpu_custom_call.1} parent=23 // pred_check
          _
        $region30: #{tpu_custom_call.1} parent=23 // pred_check_branch
          %142 = sbr.rel (%p139) target = $region32
        $region31: #{tpu_custom_call.1} parent=23 // pred_region
          %vm143 = vcmask 11264
          %144 = vst.msk [vmem:[%s1] sm:$0xf] %vm143, 0.0
        $region32: #{tpu_custom_call.1} parent=23 // pred_fallthru
          _
        %v145 = vld [vmem:[%s122] sm:$0xff]
        %v146 = vld [vmem:[%s1] sm:$0xf]
        %v148 = vcombine.high %v145, %v145
        %vm150 = vcmask 1043456
        %v151 = vsel %vm150, %v145, 0.0
        %v152 = vsel %vm150, %v148, 0.0
        %v153 = vadd.f32 %v151, %v152
        %154 = vadd.xlane.f32.xlu0 %v153
        %v155 = vpop.xlane.xlu0 %154
        %v156 = vadd.f32 %v146, %v155
        %vm157 = vcmask 3072
        %158 = vst.msk [vmem:[%s1] sm:$0xf] %vm157, %v156
        %v159 = vld [vmem:[%s1] sm:$0xf]
        %v160 = vmul.f32 %v145, %v145
        %v162 = vcombine.high %v160, %v160
        %v164 = vsel %vm150, %v160, 0.0
        %v165 = vsel %vm150, %v162, 0.0
        %v166 = vadd.f32 %v164, %v165
        %167 = vadd.xlane.f32.xlu0 %v166
        %v168 = vpop.xlane.xlu0 %167
        %v169 = vadd.f32 %v159, %v168
        %vm170 = vcmask 11272
        %171 = vst.msk [vmem:[%s1] sm:$0xf] %vm170, %v169
        // Predicated region
        $region33: #{tpu_custom_call.1} parent=23 // pred_check
          %p172 = pneg %p68
        $region34: #{tpu_custom_call.1} parent=23 // pred_check_branch
          %174 = sbr.rel (%p172) target = $region36
        $region35: #{tpu_custom_call.1} parent=23 // pred_region
          _
        $region36: #{tpu_custom_call.1} parent=23 // pred_fallthru
          _
        // Predicated region
        $region37: #{tpu_custom_call.1} parent=23 // pred_check
          %p175 = pneg %p68
        $region38: #{tpu_custom_call.1} parent=23 // pred_check_branch
          %177 = sbr.rel (%p175) target = $region40
        $region39: #{tpu_custom_call.1} parent=23 // pred_region
          _
        $region40: #{tpu_custom_call.1} parent=23 // pred_fallthru
          _
      $region24: #{tpu_custom_call.1} parent=5 // pred_fallthru
        _
      %p178 = scmp.le.s32.totalorder 2, %s10
      // Predicated region
      $region41: #{tpu_custom_call.1} parent=5 // pred_check
        %p179 = pneg %p178
      $region42: #{tpu_custom_call.1} parent=5 // pred_check_branch
        %181 = sbr.rel (%p179) target = $region44
      $region43: #{tpu_custom_call.1} parent=5 // pred_region
        %s182 = ssub.s32 %s10, 2
      $region44: #{tpu_custom_call.1} parent=5 // pred_fallthru
        _
    $region6: #{tpu_custom_call.1} parent=1 // loop_footer
      %s14 = sadd.s32 1, %s10
    $region7: #{tpu_custom_call.1} parent=1 // loop_footer_branch
      %9 = sbr.rel target = $region3
    $region8: #{tpu_custom_call.1} parent=1 // loop_exit
      _
    %183 = vsyncpa [#allocation3], 1
    %s184 = scalar_lea.sflag [#allocation3], 1
    %185 = vsyncpa %s184, 1

</llo_original>
